<compile_context>
chip_gen: v5e
topology: v5e:2x2
jax: 0.10.0
libtpu: 0.0.40
codegen_flags: <defaults>
</compile_context>

<pallas_src>
import math
from functools import partial

import jax
import jax.numpy as jnp
from jax import lax
from jax.experimental import pallas as pl
from jax.experimental.pallas import tpu as pltpu

_INV_SQRT2 = 1.0 / math.sqrt(2.0)


def _round_up(x, m):
    return ((x + m - 1) // m) * m


def _vmem_budget_bytes():
    """Usable per-kernel VMEM budget: physical capacity minus ~12.5% headroom."""
    try:
        cap = int(pltpu.get_tpu_info().vmem_capacity_bytes)
    except Exception:
        cap = 64 * 1024 * 1024  # conservative fallback, valid on v5e/v6e/v7x
    return cap - cap // 8


def _ffn_kernel(x_ref, w1_ref, b1_ref, w2_ref, b2_ref, o_ref):
    # x_ref : (tm, nIn)    input dtype (f32), streamed row tile
    # w1_ref: (nIn, nH_p)  compute dtype, resident (constant index_map)
    # b1_ref: (1, nH_p)    f32, resident
    # w2_ref: (nH_p, nIn)  compute dtype, resident
    # b2_ref: (1, nIn)     f32, resident
    # o_ref : (tm, nIn)    input dtype, streamed row tile
    x = x_ref[...].astype(w1_ref.dtype)           # cast in-kernel (no extra HBM pass)
    # first linear: MXU with f32 accumulation, f32 bias add
    h = jnp.dot(x, w1_ref[...], preferred_element_type=jnp.float32) + b1_ref[...]
    # exact erf-gelu in f32 (matches torch: x * 0.5 * (1 + erf(x / sqrt(2)))).
    # Padded hidden lanes are exactly zero and stay zero through the gelu; for nH
    # inside one 128-lane vreg row the VALU work is identical padded or not.
    h = h * 0.5 * (1.0 + lax.erf(h * jnp.float32(_INV_SQRT2)))
    # TODO(synk): dropout is identity (eval mode); train-mode dropout RNG not implemented.
    # second linear + bias
    out = jnp.dot(h.astype(w2_ref.dtype), w2_ref[...],
                  preferred_element_type=jnp.float32) + b2_ref[...]
    o_ref[...] = out.astype(o_ref.dtype)


@partial(jax.jit, static_argnames=("tm", "compute_dtype"))
def voxel_ffn(x, w1, b1, w2, b2, *, tm=None, compute_dtype=jnp.bfloat16):
    """voxel_gaussian forward: w2(gelu(w1(x))) with dropout = identity (eval mode).

    x: [..., nIn]; w1: [nIn, nH]; b1: [nH]; w2: [nH, nIn]; b2: [nIn].
    NOTE: compute_dtype defaults to bfloat16 (MXU perf path on v6e/v7x); pass
    jnp.float32 for numerics matching the f32 PyTorch reference exactly.
    """
    orig_shape = x.shape
    nIn = orig_shape[-1]
    nH = w1.shape[1]
    M = 1
    for d in orig_shape[:-1]:
        M *= d
    x2d = x.reshape(M, nIn)

    cdt = jnp.dtype(compute_dtype)
    odt = x.dtype
    csz = cdt.itemsize
    xsz = jnp.dtype(odt).itemsize

    vmem_budget = _vmem_budget_bytes()

    # Row tile: big enough to amortize the ~0.35 us per-step overhead; multiples of
    # 8 sublanes suffice (no 256-row requirement) and M is never padded in HBM.
    if tm is None:
        tm = 1024 if vmem_budget >= 96 * 1024 * 1024 else 512
    if M <= tm:
        tm_eff = M                                 # one full-height block (always legal)
    else:
        tm_eff = max(8, (tm // 8) * 8)             # multiple of 8 sublanes
    # Guarantee >= 2 grid steps when M permits so v7x's 2 TensorCores both get work.
    if M >= 16 and pl.cdiv(M, tm_eff) < 2:
        tm_eff = _round_up(pl.cdiv(M, 2), 8)
    grid = (pl.cdiv(M, tm_eff),)
    # A ragged last row tile reads out-of-bounds garbage rows; those rows are dropped
    # on store, so the visible result is exact.

    # Only the (tiny) weights/biases are padded: hidden dim to a multiple of 128
    # (lane-dense W1 columns / W2 rows); nIn dims stay unpadded (block = full dim).
    nH_p = _round_up(nH, 128)
    w1_p = jnp.zeros((nIn, nH_p), cdt).at[:, :nH].set(w1.astype(cdt))
    b1_p = jnp.zeros((1, nH_p), jnp.float32).at[0, :nH].set(b1.astype(jnp.float32))
    w2_p = jnp.zeros((nH_p, nIn), cdt).at[:nH, :].set(w2.astype(cdt))
    b2_p = b2.astype(jnp.float32).reshape(1, nIn)

    # VMEM budget: double-buffered x/out streams, resident weights (conservatively
    # counted double-buffered -- their index_map is constant so they are fetched once),
    # plus one tile's f32/bf16 intermediates; 2x headroom, clamped to the chip budget.
    # TODO(synk): single-buffer the constant-index weight operands / tile the hidden dim
    # with an "arbitrary" grid axis when resident weights approach half of VMEM
    # (large real model widths, especially v7x's 64 MiB).
    stream_bytes = 2 * tm_eff * nIn * (xsz + xsz)
    weight_bytes = (nIn * nH_p + nH_p * nIn) * csz + (nH_p + nIn) * 4
    interm_bytes = tm_eff * (nIn * (csz + 4) + nH_p * (4 + csz))
    vmem_needed = stream_bytes + 2 * weight_bytes + interm_bytes
    vmem_limit = int(min(max(2 * vmem_needed, 32 * 1024 * 1024), vmem_budget))

    cost = pl.CostEstimate(
        flops=4 * M * nIn * nH_p,                  # two matmuls
        transcendentals=M * nH_p,                  # erf per hidden element
        bytes_accessed=M * nIn * (xsz + xsz) + weight_bytes,
    )

    out2d = pl.pallas_call(
        _ffn_kernel,
        out_shape=jax.ShapeDtypeStruct((M, nIn), odt),
        grid_spec=pltpu.PrefetchScalarGridSpec(
            num_scalar_prefetch=0,
            grid=grid,
            in_specs=[
                pl.BlockSpec((tm_eff, nIn), lambda i: (i, 0)),   # x row tile (streamed)
                pl.BlockSpec((nIn, nH_p), lambda i: (0, 0)),     # W1 (resident)
                pl.BlockSpec((1, nH_p), lambda i: (0, 0)),       # b1 (resident, f32)
                pl.BlockSpec((nH_p, nIn), lambda i: (0, 0)),     # W2 (resident)
                pl.BlockSpec((1, nIn), lambda i: (0, 0)),        # b2 (resident, f32)
            ],
            out_specs=pl.BlockSpec((tm_eff, nIn), lambda i: (i, 0)),
        ),
        compiler_params=pltpu.CompilerParams(
            dimension_semantics=("parallel",),
            vmem_limit_bytes=vmem_limit,
        ),
        cost_estimate=cost,
    )(x2d, w1_p, b1_p, w2_p, b2_p)

    return out2d.reshape(orig_shape)


def _reference_ffn(x, w1, b1, w2, b2):
    h = jnp.einsum("...i,ih->...h", x, w1, precision=lax.Precision.HIGHEST) + b1
    h = h * 0.5 * (1.0 + lax.erf(h / math.sqrt(2.0)))
    return jnp.einsum("...h,hi->...i", h, w2, precision=lax.Precision.HIGHEST) + b2


if __name__ == "__main__":
    key = jax.random.PRNGKey(0)
    kx, kw1, kb1, kw2, kb2 = jax.random.split(key, 5)

    # Image-like hidden states [B, W, H, nIn] as used by the model; nHidden = intermediate size.
    B, W, H, nIn, nHidden = 2, 8, 8, 32, 64
    x = jax.random.normal(kx, (B, W, H, nIn), dtype=jnp.float32)
    # nn.Linear(nIn, nHidden).weight is (nHidden, nIn) -> stored transposed (nIn, nHidden)
    w1 = jax.random.normal(kw1, (nIn, nHidden), dtype=jnp.float32) * (1.0 / math.sqrt(nIn))
    b1 = jax.random.normal(kb1, (nHidden,), dtype=jnp.float32) * 0.01
    # nn.Linear(nHidden, nIn).weight is (nIn, nHidden) -> stored transposed (nHidden, nIn)
    w2 = jax.random.normal(kw2, (nHidden, nIn), dtype=jnp.float32) * (1.0 / math.sqrt(nHidden))
    b2 = jax.random.normal(kb2, (nIn,), dtype=jnp.float32) * 0.01

    ref = _reference_ffn(x, w1, b1, w2, b2)

    # 1) exact-f32 compute path: tight match against the erf-gelu reference.
    out_f32 = jax.block_until_ready(voxel_ffn(x, w1, b1, w2, b2, compute_dtype=jnp.float32))
    assert out_f32.shape == x.shape
    assert jnp.allclose(out_f32, ref, atol=1e-3, rtol=1e-3), "f32 path mismatch vs reference"

    # 2) default bf16-MXU path (perf config for v6e/v7x): close to the f32 reference.
    out_bf16 = jax.block_until_ready(voxel_ffn(x, w1, b1, w2, b2))
    assert out_bf16.shape == x.shape
    assert jnp.allclose(out_bf16, ref, atol=5e-2, rtol=5e-2), "bf16 path mismatch vs reference"

    # 3) multi-step grid (tm < M) to exercise streamed row tiles.
    x2 = jax.random.normal(jax.random.PRNGKey(1), (2, 16, 16, nIn), dtype=jnp.float32)
    out2 = jax.block_until_ready(voxel_ffn(x2, w1, b1, w2, b2, tm=256))
    ref2 = _reference_ffn(x2, w1, b1, w2, b2)
    assert jnp.allclose(out2, ref2, atol=5e-2, rtol=5e-2), "multi-block mismatch vs reference"

    print("KERNEL_OK")
</pallas_src>

<mosaic_0001>
module attributes {stable_mosaic.version = 11 : i64} {
  func.func @_ffn_kernel(%arg0: i32, %arg1: memref<64x32xf32, #tpu.memory_space<vmem>>, %arg2: memref<32x128xf32, #tpu.memory_space<vmem>>, %arg3: memref<1x128xf32, #tpu.memory_space<vmem>>, %arg4: memref<128x32xf32, #tpu.memory_space<vmem>>, %arg5: memref<1x32xf32, #tpu.memory_space<vmem>>, %arg6: memref<64x32xf32, #tpu.memory_space<vmem>>) attributes {dimension_semantics = [#tpu.dimension_semantics<parallel>], iteration_bounds = array<i64: 2>, scalar_prefetch = 0 : i64, scratch_operands = 0 : i64, tpu.core_type = #tpu.core_type<tc>, window_params = [{transform_indices = @transform_0, window_bounds = array<i64: 64, 32>}, {pipeline_mode = #tpu.pipeline_mode<synchronous>, transform_indices = @transform_1, window_bounds = array<i64: 32, 128>}, {pipeline_mode = #tpu.pipeline_mode<synchronous>, transform_indices = @transform_2, window_bounds = array<i64: 1, 128>}, {pipeline_mode = #tpu.pipeline_mode<synchronous>, transform_indices = @transform_3, window_bounds = array<i64: 128, 32>}, {pipeline_mode = #tpu.pipeline_mode<synchronous>, transform_indices = @transform_4, window_bounds = array<i64: 1, 32>}, {transform_indices = @transform_5, window_bounds = array<i64: 64, 32>}]} {
    %c0 = arith.constant 0 : index
    %c0_0 = arith.constant 0 : index
    %0 = vector.load %arg1[%c0, %c0_0] : memref<64x32xf32, #tpu.memory_space<vmem>>, vector<64x32xf32>
    %c0_1 = arith.constant 0 : index
    %c0_2 = arith.constant 0 : index
    %1 = vector.load %arg2[%c0_1, %c0_2] : memref<32x128xf32, #tpu.memory_space<vmem>>, vector<32x128xf32>
    %cst = arith.constant dense<0.000000e+00> : vector<64x128xf32>
    %2 = tpu.matmul %0, %1, %cst {dimension_numbers = #tpu.dot_dimension_numbers<[1], [0], [0], [1], [0, 0, 1, 1], [], []>} : vector<64x32xf32>, vector<32x128xf32>, vector<64x128xf32> -> vector<64x128xf32>
    %c0_3 = arith.constant 0 : index
    %c0_4 = arith.constant 0 : index
    %3 = vector.load %arg3[%c0_3, %c0_4] : memref<1x128xf32, #tpu.memory_space<vmem>>, vector<1x128xf32>
    %4 = vector.broadcast %3 : vector<1x128xf32> to vector<64x128xf32>
    %5 = arith.addf %2, %4 : vector<64x128xf32>
    %cst_5 = arith.constant 5.000000e-01 : f32
    %6 = vector.broadcast %cst_5 : f32 to vector<64x128xf32>
    %7 = arith.mulf %5, %6 : vector<64x128xf32>
    %cst_6 = arith.constant 0.707106769 : f32
    %8 = vector.broadcast %cst_6 : f32 to vector<64x128xf32>
    %9 = arith.mulf %5, %8 : vector<64x128xf32>
    %10 = math.erf %9 : vector<64x128xf32>
    %cst_7 = arith.constant 1.000000e+00 : f32
    %11 = vector.broadcast %cst_7 : f32 to vector<64x128xf32>
    %12 = arith.addf %11, %10 : vector<64x128xf32>
    %13 = arith.mulf %7, %12 : vector<64x128xf32>
    %c0_8 = arith.constant 0 : index
    %c0_9 = arith.constant 0 : index
    %14 = vector.load %arg4[%c0_8, %c0_9] : memref<128x32xf32, #tpu.memory_space<vmem>>, vector<128x32xf32>
    %cst_10 = arith.constant dense<0.000000e+00> : vector<64x32xf32>
    %15 = tpu.matmul %13, %14, %cst_10 {dimension_numbers = #tpu.dot_dimension_numbers<[1], [0], [0], [1], [0, 0, 1, 1], [], []>} : vector<64x128xf32>, vector<128x32xf32>, vector<64x32xf32> -> vector<64x32xf32>
    %c0_11 = arith.constant 0 : index
    %c0_12 = arith.constant 0 : index
    %16 = vector.load %arg5[%c0_11, %c0_12] : memref<1x32xf32, #tpu.memory_space<vmem>>, vector<1x32xf32>
    %17 = vector.broadcast %16 : vector<1x32xf32> to vector<64x32xf32>
    %18 = arith.addf %15, %17 : vector<64x32xf32>
    %c0_13 = arith.constant 0 : index
    %c0_14 = arith.constant 0 : index
    %19 = vector.load %arg6[%c0_13, %c0_14] : memref<64x32xf32, #tpu.memory_space<vmem>>, vector<64x32xf32>
    tpu.vector_store %arg6[%c0_13, %c0_14], %18 {strides = array<i32>} : memref<64x32xf32, #tpu.memory_space<vmem>>, vector<64x32xf32>,
    return
  }
  func.func @transform_0(%arg0: i32) -> (i32, i32) {
    %c0_i32 = arith.constant 0 : i32
    %c0_i32_0 = arith.constant 0 : i32
    return %arg0, %c0_i32 : i32, i32
  }
  func.func @transform_1(%arg0: i32) -> (i32, i32) {
    %c0_i32 = arith.constant 0 : i32
    %c0_i32_0 = arith.constant 0 : i32
    %c0_i32_1 = arith.constant 0 : i32
    return %c0_i32, %c0_i32_0 : i32, i32
  }
  func.func @transform_2(%arg0: i32) -> (i32, i32) {
    %c0_i32 = arith.constant 0 : i32
    %c0_i32_0 = arith.constant 0 : i32
    %c0_i32_1 = arith.constant 0 : i32
    return %c0_i32, %c0_i32_0 : i32, i32
  }
  func.func @transform_3(%arg0: i32) -> (i32, i32) {
    %c0_i32 = arith.constant 0 : i32
    %c0_i32_0 = arith.constant 0 : i32
    %c0_i32_1 = arith.constant 0 : i32
    return %c0_i32, %c0_i32_0 : i32, i32
  }
  func.func @transform_4(%arg0: i32) -> (i32, i32) {
    %c0_i32 = arith.constant 0 : i32
    %c0_i32_0 = arith.constant 0 : i32
    %c0_i32_1 = arith.constant 0 : i32
    return %c0_i32, %c0_i32_0 : i32, i32
  }
  func.func @transform_5(%arg0: i32) -> (i32, i32) {
    %c0_i32 = arith.constant 0 : i32
    %c0_i32_0 = arith.constant 0 : i32
    return %arg0, %c0_i32 : i32, i32
  }
}

</mosaic_0001>

<llo_original>
// kernel: voxel_ffn.1
$region0: #{voxel_ffn.1}
  #allocation0 [shape = 'u32[]', space=smem, size = 0x4, offset = 0x4, fixed_abs, tag = 'smem constant byte address 0x4 - core index']
  #allocation1 [shape = 'u32[72,128]{1,0:T(1,128)}', space=vmem, size = 0x9000, scoped, tag = 'internal scratch']
  %s0 = inlined_call_operand.vmem [shape: f32[128,32], index: 0, kind: input, shape index: {}]
  %s1 = inlined_call_operand.vmem [shape: f32[32,128], index: 1, kind: input, shape index: {}]
  %s2 = inlined_call_operand.vmem [shape: f32[1,128], index: 2, kind: input, shape index: {}]
  %s3 = inlined_call_operand.vmem [shape: f32[128,32], index: 3, kind: input, shape index: {}]
  %s4 = inlined_call_operand.vmem [shape: f32[1,32], index: 4, kind: input, shape index: {}]
  %s5 = inlined_call_operand.hbm [shape: f32[128,32], index: 5, kind: output, shape index: {}]
  %s6 = sld [smem:[#allocation0]]
  $region53: #{voxel_ffn.1} parent=0
    _
  %s8 = ssub.s32 1, %s6
  %s9 = scalar_select 0, %s8, %s6
  $region1: #{voxel_ffn.1} parent=0
    #allocation2 [shape = 'u8[65536]{0}', space=vmem, size = 0x10000, scoped, tag = 'output window, operand 0']
    #allocation3 [shape = 's32[2]{0}', space=sflag, size = 0x8, scoped, tag = 'scoped memory for voxel_ffn.1']
    %10 = vsyncpa [#allocation3], 0
    %s11 = scalar_lea.sflag [#allocation3], 1
    %12 = vsyncpa %s11, 0
    loop: start=0, step=1, limit=4
    $region2: #{voxel_ffn.1} parent=1 // loop_pre_header
      _
    $region3: #{voxel_ffn.1} parent=1 // loop_header
      %s14 = sphi 0, %s18
      %p15 = scmp.ge.s32.totalorder %s14, 4
      %s24 = sphi 0, %s26
      %s27 = sphi 0, %s24
      %s28 = sphi 0, %s27
      %s44 = sphi 0, %s28
      %s48 = sphi 0, %s48
      %s50 = sphi 0, %s48
      %s51 = sphi 0, %s50
      %s65 = sphi 0, %s51
      %s69 = sphi 0, %s69
      %s71 = sphi 0, %s69
      %s72 = sphi 0, %s71
      %s86 = sphi 0, %s72
      %s90 = sphi 0, %s90
      %s92 = sphi 0, %s90
      %s93 = sphi 0, %s92
      %s107 = sphi 0, %s93
      %s111 = sphi 0, %s111
      %s113 = sphi 0, %s111
      %s114 = sphi 0, %s113
      %s128 = sphi 0, %s114
      %s134 = sphi 0, %s136
      %s137 = sphi 0, %s134
      %s138 = sphi 0, %s137
      %s154 = sphi 0, %s138
    $region4: #{voxel_ffn.1} parent=1 // loop_header_branch
      %17 = sbr.rel (%p15) target = $region8
    $region5: #{voxel_ffn.1} parent=1 // loop_body
      %s19 = ssub.s32 %s14, 1
      %s20 = ssub.s32 %s14, 2
      %s21 = sadd.s32 %s14, 1
      %s22 = ssub.s32 %s14, %s21
      %p23 = scmp.eq.s32.totalorder %s22, 0
      %s25 = sadd.s32 %s24, 1
      %s26 = scalar_select %p23, %s24, %s25
      %p29 = pneg %p23
      %p30 = scmp.eq.s32.totalorder %s14, 1
      %p31 = por %p29, %p30
      %p32 = scmp.ne.s32.totalorder %s24, %s27
      %p33 = scmp.eq.s32.totalorder %s14, 0
      %p34 = por %p32, %p33
      %p35 = scmp.ne.s32.totalorder %s24, %s27
      %p36 = scmp.eq.s32.totalorder %s19, 1
      %p37 = por %p35, %p36
      %p38 = scmp.ne.s32.totalorder %s27, %s28
      %p39 = scmp.eq.s32.totalorder %s19, 0
      %p40 = por %p38, %p39
      %p41 = scmp.ne.s32.totalorder %s27, %s28
      %p42 = scmp.eq.s32.totalorder %s20, 1
      %p43 = por %p41, %p42
      %p45 = scmp.ne.s32.totalorder %s28, %s44
      %p46 = scmp.eq.s32.totalorder %s20, 0
      %p47 = por %p45, %p46
      %s49 = sadd.s32 %s48, 1
      %p52 = scmp.eq.s32.totalorder %s14, 1
      %p53 = scmp.ne.s32.totalorder %s48, %s50
      %p54 = scmp.eq.s32.totalorder %s14, 0
      %p55 = por %p53, %p54
      %p56 = scmp.ne.s32.totalorder %s48, %s50
      %p57 = scmp.eq.s32.totalorder %s19, 1
      %p58 = por %p56, %p57
      %p59 = scmp.ne.s32.totalorder %s50, %s51
      %p60 = scmp.eq.s32.totalorder %s19, 0
      %p61 = por %p59, %p60
      %p62 = scmp.ne.s32.totalorder %s50, %s51
      %p63 = scmp.eq.s32.totalorder %s20, 1
      %p64 = por %p62, %p63
      %p66 = scmp.ne.s32.totalorder %s51, %s65
      %p67 = scmp.eq.s32.totalorder %s20, 0
      %p68 = por %p66, %p67
      %s70 = sadd.s32 %s69, 1
      %p73 = scmp.eq.s32.totalorder %s14, 1
      %p74 = scmp.ne.s32.totalorder %s69, %s71
      %p75 = scmp.eq.s32.totalorder %s14, 0
      %p76 = por %p74, %p75
      %p77 = scmp.ne.s32.totalorder %s69, %s71
      %p78 = scmp.eq.s32.totalorder %s19, 1
      %p79 = por %p77, %p78
      %p80 = scmp.ne.s32.totalorder %s71, %s72
      %p81 = scmp.eq.s32.totalorder %s19, 0
      %p82 = por %p80, %p81
      %p83 = scmp.ne.s32.totalorder %s71, %s72
      %p84 = scmp.eq.s32.totalorder %s20, 1
      %p85 = por %p83, %p84
      %p87 = scmp.ne.s32.totalorder %s72, %s86
      %p88 = scmp.eq.s32.totalorder %s20, 0
      %p89 = por %p87, %p88
      %s91 = sadd.s32 %s90, 1
      %p94 = scmp.eq.s32.totalorder %s14, 1
      %p95 = scmp.ne.s32.totalorder %s90, %s92
      %p96 = scmp.eq.s32.totalorder %s14, 0
      %p97 = por %p95, %p96
      %p98 = scmp.ne.s32.totalorder %s90, %s92
      %p99 = scmp.eq.s32.totalorder %s19, 1
      %p100 = por %p98, %p99
      %p101 = scmp.ne.s32.totalorder %s92, %s93
      %p102 = scmp.eq.s32.totalorder %s19, 0
      %p103 = por %p101, %p102
      %p104 = scmp.ne.s32.totalorder %s92, %s93
      %p105 = scmp.eq.s32.totalorder %s20, 1
      %p106 = por %p104, %p105
      %p108 = scmp.ne.s32.totalorder %s93, %s107
      %p109 = scmp.eq.s32.totalorder %s20, 0
      %p110 = por %p108, %p109
      %s112 = sadd.s32 %s111, 1
      %p115 = scmp.eq.s32.totalorder %s14, 1
      %p116 = scmp.ne.s32.totalorder %s111, %s113
      %p117 = scmp.eq.s32.totalorder %s14, 0
      %p118 = por %p116, %p117
      %p119 = scmp.ne.s32.totalorder %s111, %s113
      %p120 = scmp.eq.s32.totalorder %s19, 1
      %p121 = por %p119, %p120
      %p122 = scmp.ne.s32.totalorder %s113, %s114
      %p123 = scmp.eq.s32.totalorder %s19, 0
      %p124 = por %p122, %p123
      %p125 = scmp.ne.s32.totalorder %s113, %s114
      %p126 = scmp.eq.s32.totalorder %s20, 1
      %p127 = por %p125, %p126
      %p129 = scmp.ne.s32.totalorder %s114, %s128
      %p130 = scmp.eq.s32.totalorder %s20, 0
      %p131 = por %p129, %p130
      %s132 = ssub.s32 %s14, %s21
      %p133 = scmp.eq.s32.totalorder %s132, 0
      %s135 = sadd.s32 %s134, 1
      %s136 = scalar_select %p133, %s134, %s135
      %p139 = pneg %p133
      %p140 = scmp.eq.s32.totalorder %s14, 1
      %p141 = por %p139, %p140
      %p142 = scmp.ne.s32.totalorder %s134, %s137
      %p143 = scmp.eq.s32.totalorder %s14, 0
      %p144 = por %p142, %p143
      %p145 = scmp.ne.s32.totalorder %s134, %s137
      %p146 = scmp.eq.s32.totalorder %s19, 1
      %p147 = por %p145, %p146
      %p148 = scmp.ne.s32.totalorder %s137, %s138
      %p149 = scmp.eq.s32.totalorder %s19, 0
      %p150 = por %p148, %p149
      %p151 = scmp.ne.s32.totalorder %s137, %s138
      %p152 = scmp.eq.s32.totalorder %s20, 1
      %p153 = por %p151, %p152
      %p155 = scmp.ne.s32.totalorder %s138, %s154
      %p156 = scmp.eq.s32.totalorder %s20, 0
      %p157 = por %p155, %p156
      %p158 = scmp.le.s32.totalorder 1, %s14
      %p159 = scmp.lt.s32.totalorder %s14, 3
      %p160 = pnand %p158, %p159
      %p161 = pneg %p160
      // Predicated region
      $region9: #{voxel_ffn.1} parent=5 // pred_check
        _
      $region10: #{voxel_ffn.1} parent=5 // pred_check_branch
        %163 = sbr.rel (%p160) target = $region12
      $region11: #{voxel_ffn.1} parent=5 // pred_region
        %s164 = ssub.s32 %s14, 1
        // Predicated region
        $region13: #{voxel_ffn.1} parent=11 // pred_check
          %p165 = pneg %p61
        $region14: #{voxel_ffn.1} parent=11 // pred_check_branch
          %167 = sbr.rel (%p165) target = $region16
        $region15: #{voxel_ffn.1} parent=11 // pred_region
          _
        $region16: #{voxel_ffn.1} parent=11 // pred_fallthru
          _
        // Predicated region
        $region17: #{voxel_ffn.1} parent=11 // pred_check
          %p168 = pneg %p82
        $region18: #{voxel_ffn.1} parent=11 // pred_check_branch
          %170 = sbr.rel (%p168) target = $region20
        $region19: #{voxel_ffn.1} parent=11 // pred_region
          _
        $region20: #{voxel_ffn.1} parent=11 // pred_fallthru
          _
        // Predicated region
        $region21: #{voxel_ffn.1} parent=11 // pred_check
          %p171 = pneg %p103
        $region22: #{voxel_ffn.1} parent=11 // pred_check_branch
          %173 = sbr.rel (%p171) target = $region24
        $region23: #{voxel_ffn.1} parent=11 // pred_region
          _
        $region24: #{voxel_ffn.1} parent=11 // pred_fallthru
          _
        // Predicated region
        $region25: #{voxel_ffn.1} parent=11 // pred_check
          %p174 = pneg %p124
        $region26: #{voxel_ffn.1} parent=11 // pred_check_branch
          %176 = sbr.rel (%p174) target = $region28
        $region27: #{voxel_ffn.1} parent=11 // pred_region
          _
        $region28: #{voxel_ffn.1} parent=11 // pred_fallthru
          _
      $region12: #{voxel_ffn.1} parent=5 // pred_fallthru
        _
      %p177 = scmp.lt.s32.totalorder %s14, 2
      // Predicated region
      $region29: #{voxel_ffn.1} parent=5 // pred_check
        %p178 = pneg %p177
      $region30: #{voxel_ffn.1} parent=5 // pred_check_branch
        %180 = sbr.rel (%p178) target = $region32
      $region31: #{voxel_ffn.1} parent=5 // pred_region
        // Predicated region
        $region33: #{voxel_ffn.1} parent=31 // pred_check
          %p181 = pneg %p34
        $region34: #{voxel_ffn.1} parent=31 // pred_check_branch
          %183 = sbr.rel (%p181) target = $region36
        $region35: #{voxel_ffn.1} parent=31 // pred_region
          %s184 = smul.u32 8, %s14
          %p185 = scmp.lt.s32.totalorder %s184, 15
          %s186 = scalar_select %p185, %s184, 15
          %s187 = smul.addr %s186, 8
          %s188 = scalar_lea.vmem %s0, %s187
          %s189 = smul.u32 8, %s14
        $region36: #{voxel_ffn.1} parent=31 // pred_fallthru
          _
      $region32: #{voxel_ffn.1} parent=5 // pred_fallthru
        _
      %p190 = scmp.le.s32.totalorder 1, %s14
      %p191 = scmp.lt.s32.totalorder %s14, 3
      %p192 = pnand %p190, %p191
      %p193 = pneg %p192
      // Predicated region
      $region37: #{voxel_ffn.1} parent=5 // pred_check
        _
      $region38: #{voxel_ffn.1} parent=5 // pred_check_branch
        %195 = sbr.rel (%p192) target = $region40
      $region39: #{voxel_ffn.1} parent=5 // pred_region
        %s196 = ssub.s32 %s14, 1
        %s197 = smul.u32 8, %s19
        %p198 = scmp.lt.s32.totalorder %s197, 15
        %s199 = scalar_select %p198, %s197, 15
        %s200 = smul.addr %s199, 8
        %s201 = scalar_lea.vmem %s0, %s200
        %p202 = pneg %p40
        %p203 = pneg %p37
        %p204 = pneg %p61
        %p205 = pneg %p58
        %p206 = pneg %p82
        %p207 = pneg %p79
        %p208 = pneg %p103
        %p209 = pneg %p100
        %p210 = pneg %p124
        %p211 = pneg %p121
        %p212 = pneg %p150
        %p213 = pneg %p147
        %s214 = sand.u32 %s137, 1
        %s215 = scalar_lea.sflag [#allocation3], %s214
        %s216 = sand.u32 %s137, 1
        %s217 = smul.addr %s216, 64
        %s218 = scalar_lea.vmem [#allocation2], %s217
        %s219 = smul.u32 8, %s19
        %p220 = scmp.lt.s32.totalorder %s219, 15
        %s221 = scalar_select %p220, %s219, 15
        %s222 = smul.addr %s221, 8
        %s223 = scalar_lea.vmem %s0, %s222
        %s224 = smul.u32 8, %s19
        %s225 = smul.u32 8, %s19
        %v226 = vld [vmem:[%s223] sm:$0xff]
        %v227 = vld [vmem:[%s223 + $0x8] sm:$0xff]
        %v228 = vld [vmem:[%s223 + $0x10] sm:$0xff]
        %v229 = vld [vmem:[%s223 + $0x18] sm:$0xff]
        %v230 = vld [vmem:[%s223 + $0x20] sm:$0xff]
        %v231 = vld [vmem:[%s223 + $0x28] sm:$0xff]
        %v232 = vld [vmem:[%s223 + $0x30] sm:$0xff]
        %v233 = vld [vmem:[%s223 + $0x38] sm:$0xff]
        %v234 = vld [vmem:[%s1] sm:$0xff]
        %v235 = vld [vmem:[%s1 + $0x8] sm:$0xff]
        %v236 = vld [vmem:[%s1 + $0x10] sm:$0xff]
        %v237 = vld [vmem:[%s1 + $0x18] sm:$0xff]
        %v238 = vld [vmem:[%s2] sm:$0x1]
        %v240 = vperm.slane %v238, 0
        %vm242 = vcmask 261120
        %v244 = vsel %vm242, %v226, 0
        %v247 = vsel %vm242, %v227, 0
        %v250 = vsel %vm242, %v228, 0
        %v253 = vsel %vm242, %v229, 0
        %v256 = vsel %vm242, %v230, 0
        %v259 = vsel %vm242, %v231, 0
        %v262 = vsel %vm242, %v232, 0
        %v265 = vsel %vm242, %v233, 0
        %267 = vmatpush.msra.mxu0 0.0
        %268 = vmatpush.msra.mxu0 0.0
        %269 = vmatpush.msra.mxu0 0.0
        %270 = vmatpush.msra.mxu0 0.0
        %271 = vmatpush.msra.mxu0 0.0
        %272 = vmatpush.msra.mxu0 0.0
        %273 = vmatpush.msra.mxu0 0.0
        %274 = vmatpush.msra.mxu0 0.0
        %275 = vmatpush.msra.mxu0 0.0
        %276 = vmatpush.msra.mxu0 0.0
        %277 = vmatpush.msra.mxu0 0.0
        %278 = vmatpush.msra.mxu0 0.0
        %279 = vmatpush.msra.mxu0 %v237
        %280 = vmatpush.msra.mxu0 %v236
        %281 = vmatpush.msra.mxu0 %v235
        %282 = vmatpush.msra.mxu0 %v234
        %283 = vmatmul.f32.gmra.mxu0 %v244
        %v284 = vpop.f32.mrf.mxu0
        %v285 = vadd.f32 %v240, %v284
        %286 = vmatmul.f32.gmra.mxu0 %v247
        %v287 = vpop.f32.mrf.mxu0
        %v288 = vadd.f32 %v240, %v287
        %289 = vmatmul.f32.gmra.mxu0 %v250
        %v290 = vpop.f32.mrf.mxu0
        %v291 = vadd.f32 %v240, %v290
        %292 = vmatmul.f32.gmra.mxu0 %v253
        %v293 = vpop.f32.mrf.mxu0
        %v294 = vadd.f32 %v240, %v293
        %295 = vmatmul.f32.gmra.mxu0 %v256
        %v296 = vpop.f32.mrf.mxu0
        %v297 = vadd.f32 %v240, %v296
        %298 = vmatmul.f32.gmra.mxu0 %v259
        %v299 = vpop.f32.mrf.mxu0
        %v300 = vadd.f32 %v240, %v299
        %301 = vmatmul.f32.gmra.mxu0 %v262
        %v302 = vpop.f32.mrf.mxu0
        %v303 = vadd.f32 %v240, %v302
        %304 = vmatmul.f32.gmra.mxu0 %v265
        %v305 = vpop.f32.mrf.mxu0
        %v306 = vadd.f32 %v240, %v305
        %307 = vdwg.mxu0
        %v308 = vmul.f32 %v285, 0.5
        %v309 = vmul.f32 %v288, 0.5
        %v310 = vmul.f32 %v291, 0.5
        %v311 = vmul.f32 %v294, 0.5
        %v312 = vmul.f32 %v297, 0.5
        %v313 = vmul.f32 %v300, 0.5
        %v314 = vmul.f32 %v303, 0.5
        %v315 = vmul.f32 %v306, 0.5
        %v316 = vmul.f32 %v285, 0.70710677
        %v317 = vmul.f32 %v288, 0.70710677
        %v318 = vmul.f32 %v291, 0.70710677
        %v319 = vmul.f32 %v294, 0.70710677
        %v320 = vmul.f32 %v297, 0.70710677
        %v321 = vmul.f32 %v300, 0.70710677
        %v322 = vmul.f32 %v303, 0.70710677
        %v323 = vmul.f32 %v306, 0.70710677
        %v324 = vmul.f32 %v316, %v316
        %v325 = vmin.f32 16.0, %v324
        %v326 = vmul.f32 %v325, 2.1237322e-06
        %v327 = vadd.f32 %v326, 0.00028619796
        %v328 = vmul.f32 %v325, %v327
        %v329 = vadd.f32 %v328, 0.0036580483
        %v330 = vmul.f32 %v325, %v329
        %v331 = vadd.f32 %v330, 0.05243302
        %v332 = vmul.f32 %v325, %v331
        %v333 = vadd.f32 %v332, 0.18741608
        %v334 = vmul.f32 %v325, %v333
        %v335 = vadd.f32 %v334, 1.1283791
        %v336 = vmul.f32 %v316, %v335
        %v337 = vmul.f32 %v325, 3.8918573e-05
        %v338 = vadd.f32 %v337, 0.001143296
        %v339 = vmul.f32 %v325, %v338
        %v340 = vadd.f32 %v339, 0.014752088
        %v341 = vmul.f32 %v325, %v340
        %v342 = vadd.f32 %v341, 0.112945676
        %v343 = vmul.f32 %v325, %v342
        %v344 = vadd.f32 %v343, 0.4994258
        %v345 = vmul.f32 %v325, %v344
        %v346 = vadd.f32 %v345, 1.0
        %v347 = vrcp.pop %v346
        %v348 = vmul.f32 %v346, %v347
        %v349 = vsub.f32 1.0, %v348
        %v350 = vmul.f32 %v347, %v349
        %v351 = vadd.f32 %v347, %v350
        %vm352 = vweird.f32 %v346
        %vm353 = vweird.f32 %v347
        %vm354 = vmor %vm352, %vm353
        %v355 = vsel %vm354, %v347, %v351
        %v356 = vand.u32 2147483647, %v346
        %vm357 = vcmp.eq.f32.partialorder %v356, 8.507059e+37
        %v358 = vand.u32 %v346, 2147483648
        %v359 = vor.u32 1.1754944e-38, %v358
        %v360 = vsel %vm357, %v359, %v355
        %v361 = vmul.f32 %v336, %v360
        %v362 = vmin.f32 %v361, 1.0
        %v363 = vmax.f32 %v362, -1.0
        %v364 = vmul.f32 %v317, %v317
        %v365 = vmin.f32 16.0, %v364
        %v366 = vmul.f32 %v365, 2.1237322e-06
        %v367 = vadd.f32 %v366, 0.00028619796
        %v368 = vmul.f32 %v365, %v367
        %v369 = vadd.f32 %v368, 0.0036580483
        %v370 = vmul.f32 %v365, %v369
        %v371 = vadd.f32 %v370, 0.05243302
        %v372 = vmul.f32 %v365, %v371
        %v373 = vadd.f32 %v372, 0.18741608
        %v374 = vmul.f32 %v365, %v373
        %v375 = vadd.f32 %v374, 1.1283791
        %v376 = vmul.f32 %v317, %v375
        %v377 = vmul.f32 %v365, 3.8918573e-05
        %v378 = vadd.f32 %v377, 0.001143296
        %v379 = vmul.f32 %v365, %v378
        %v380 = vadd.f32 %v379, 0.014752088
        %v381 = vmul.f32 %v365, %v380
        %v382 = vadd.f32 %v381, 0.112945676
        %v383 = vmul.f32 %v365, %v382
        %v384 = vadd.f32 %v383, 0.4994258
        %v385 = vmul.f32 %v365, %v384
        %v386 = vadd.f32 %v385, 1.0
        %v387 = vrcp.pop %v386
        %v388 = vmul.f32 %v386, %v387
        %v389 = vsub.f32 1.0, %v388
        %v390 = vmul.f32 %v387, %v389
        %v391 = vadd.f32 %v387, %v390
        %vm392 = vweird.f32 %v386
        %vm393 = vweird.f32 %v387
        %vm394 = vmor %vm392, %vm393
        %v395 = vsel %vm394, %v387, %v391
        %v396 = vand.u32 2147483647, %v386
        %vm397 = vcmp.eq.f32.partialorder %v396, 8.507059e+37
        %v398 = vand.u32 %v386, 2147483648
        %v399 = vor.u32 1.1754944e-38, %v398
        %v400 = vsel %vm397, %v399, %v395
        %v401 = vmul.f32 %v376, %v400
        %v402 = vmin.f32 %v401, 1.0
        %v403 = vmax.f32 %v402, -1.0
        %v404 = vmul.f32 %v318, %v318
        %v405 = vmin.f32 16.0, %v404
        %v406 = vmul.f32 %v405, 2.1237322e-06
        %v407 = vadd.f32 %v406, 0.00028619796
        %v408 = vmul.f32 %v405, %v407
        %v409 = vadd.f32 %v408, 0.0036580483
        %v410 = vmul.f32 %v405, %v409
        %v411 = vadd.f32 %v410, 0.05243302
        %v412 = vmul.f32 %v405, %v411
        %v413 = vadd.f32 %v412, 0.18741608
        %v414 = vmul.f32 %v405, %v413
        %v415 = vadd.f32 %v414, 1.1283791
        %v416 = vmul.f32 %v318, %v415
        %v417 = vmul.f32 %v405, 3.8918573e-05
        %v418 = vadd.f32 %v417, 0.001143296
        %v419 = vmul.f32 %v405, %v418
        %v420 = vadd.f32 %v419, 0.014752088
        %v421 = vmul.f32 %v405, %v420
        %v422 = vadd.f32 %v421, 0.112945676
        %v423 = vmul.f32 %v405, %v422
        %v424 = vadd.f32 %v423, 0.4994258
        %v425 = vmul.f32 %v405, %v424
        %v426 = vadd.f32 %v425, 1.0
        %v427 = vrcp.pop %v426
        %v428 = vmul.f32 %v426, %v427
        %v429 = vsub.f32 1.0, %v428
        %v430 = vmul.f32 %v427, %v429
        %v431 = vadd.f32 %v427, %v430
        %vm432 = vweird.f32 %v426
        %vm433 = vweird.f32 %v427
        %vm434 = vmor %vm432, %vm433
        %v435 = vsel %vm434, %v427, %v431
        %v436 = vand.u32 2147483647, %v426
        %vm437 = vcmp.eq.f32.partialorder %v436, 8.507059e+37
        %v438 = vand.u32 %v426, 2147483648
        %v439 = vor.u32 1.1754944e-38, %v438
        %v440 = vsel %vm437, %v439, %v435
        %v441 = vmul.f32 %v416, %v440
        %v442 = vmin.f32 %v441, 1.0
        %v443 = vmax.f32 %v442, -1.0
        %v444 = vmul.f32 %v319, %v319
        %v445 = vmin.f32 16.0, %v444
        %v446 = vmul.f32 %v445, 2.1237322e-06
        %v447 = vadd.f32 %v446, 0.00028619796
        %v448 = vmul.f32 %v445, %v447
        %v449 = vadd.f32 %v448, 0.0036580483
        %v450 = vmul.f32 %v445, %v449
        %v451 = vadd.f32 %v450, 0.05243302
        %v452 = vmul.f32 %v445, %v451
        %v453 = vadd.f32 %v452, 0.18741608
        %v454 = vmul.f32 %v445, %v453
        %v455 = vadd.f32 %v454, 1.1283791
        %v456 = vmul.f32 %v319, %v455
        %v457 = vmul.f32 %v445, 3.8918573e-05
        %v458 = vadd.f32 %v457, 0.001143296
        %v459 = vmul.f32 %v445, %v458
        %v460 = vadd.f32 %v459, 0.014752088
        %v461 = vmul.f32 %v445, %v460
        %v462 = vadd.f32 %v461, 0.112945676
        %v463 = vmul.f32 %v445, %v462
        %v464 = vadd.f32 %v463, 0.4994258
        %v465 = vmul.f32 %v445, %v464
        %v466 = vadd.f32 %v465, 1.0
        %v467 = vrcp.pop %v466
        %v468 = vmul.f32 %v466, %v467
        %v469 = vsub.f32 1.0, %v468
        %v470 = vmul.f32 %v467, %v469
        %v471 = vadd.f32 %v467, %v470
        %vm472 = vweird.f32 %v466
        %vm473 = vweird.f32 %v467
        %vm474 = vmor %vm472, %vm473
        %v475 = vsel %vm474, %v467, %v471
        %v476 = vand.u32 2147483647, %v466
        %vm477 = vcmp.eq.f32.partialorder %v476, 8.507059e+37
        %v478 = vand.u32 %v466, 2147483648
        %v479 = vor.u32 1.1754944e-38, %v478
        %v480 = vsel %vm477, %v479, %v475
        %v481 = vmul.f32 %v456, %v480
        %v482 = vmin.f32 %v481, 1.0
        %v483 = vmax.f32 %v482, -1.0
        %v484 = vmul.f32 %v320, %v320
        %v485 = vmin.f32 16.0, %v484
        %v486 = vmul.f32 %v485, 2.1237322e-06
        %v487 = vadd.f32 %v486, 0.00028619796
        %v488 = vmul.f32 %v485, %v487
        %v489 = vadd.f32 %v488, 0.0036580483
        %v490 = vmul.f32 %v485, %v489
        %v491 = vadd.f32 %v490, 0.05243302
        %v492 = vmul.f32 %v485, %v491
        %v493 = vadd.f32 %v492, 0.18741608
        %v494 = vmul.f32 %v485, %v493
        %v495 = vadd.f32 %v494, 1.1283791
        %v496 = vmul.f32 %v320, %v495
        %v497 = vmul.f32 %v485, 3.8918573e-05
        %v498 = vadd.f32 %v497, 0.001143296
        %v499 = vmul.f32 %v485, %v498
        %v500 = vadd.f32 %v499, 0.014752088
        %v501 = vmul.f32 %v485, %v500
        %v502 = vadd.f32 %v501, 0.112945676
        %v503 = vmul.f32 %v485, %v502
        %v504 = vadd.f32 %v503, 0.4994258
        %v505 = vmul.f32 %v485, %v504
        %v506 = vadd.f32 %v505, 1.0
        %v507 = vrcp.pop %v506
        %v508 = vmul.f32 %v506, %v507
        %v509 = vsub.f32 1.0, %v508
        %v510 = vmul.f32 %v507, %v509
        %v511 = vadd.f32 %v507, %v510
        %vm512 = vweird.f32 %v506
        %vm513 = vweird.f32 %v507
        %vm514 = vmor %vm512, %vm513
        %v515 = vsel %vm514, %v507, %v511
        %v516 = vand.u32 2147483647, %v506
        %vm517 = vcmp.eq.f32.partialorder %v516, 8.507059e+37
        %v518 = vand.u32 %v506, 2147483648
        %v519 = vor.u32 1.1754944e-38, %v518
        %v520 = vsel %vm517, %v519, %v515
        %v521 = vmul.f32 %v496, %v520
        %v522 = vmin.f32 %v521, 1.0
        %v523 = vmax.f32 %v522, -1.0
        %v524 = vmul.f32 %v321, %v321
        %v525 = vmin.f32 16.0, %v524
        %v526 = vmul.f32 %v525, 2.1237322e-06
        %v527 = vadd.f32 %v526, 0.00028619796
        %v528 = vmul.f32 %v525, %v527
        %v529 = vadd.f32 %v528, 0.0036580483
        %v530 = vmul.f32 %v525, %v529
        %v531 = vadd.f32 %v530, 0.05243302
        %v532 = vmul.f32 %v525, %v531
        %v533 = vadd.f32 %v532, 0.18741608
        %v534 = vmul.f32 %v525, %v533
        %v535 = vadd.f32 %v534, 1.1283791
        %v536 = vmul.f32 %v321, %v535
        %v537 = vmul.f32 %v525, 3.8918573e-05
        %v538 = vadd.f32 %v537, 0.001143296
        %v539 = vmul.f32 %v525, %v538
        %v540 = vadd.f32 %v539, 0.014752088
        %v541 = vmul.f32 %v525, %v540
        %v542 = vadd.f32 %v541, 0.112945676
        %v543 = vmul.f32 %v525, %v542
        %v544 = vadd.f32 %v543, 0.4994258
        %v545 = vmul.f32 %v525, %v544
        %v546 = vadd.f32 %v545, 1.0
        %v547 = vrcp.pop %v546
        %v548 = vmul.f32 %v546, %v547
        %v549 = vsub.f32 1.0, %v548
        %v550 = vmul.f32 %v547, %v549
        %v551 = vadd.f32 %v547, %v550
        %vm552 = vweird.f32 %v546
        %vm553 = vweird.f32 %v547
        %vm554 = vmor %vm552, %vm553
        %v555 = vsel %vm554, %v547, %v551
        %v556 = vand.u32 2147483647, %v546
        %vm557 = vcmp.eq.f32.partialorder %v556, 8.507059e+37
        %v558 = vand.u32 %v546, 2147483648
        %v559 = vor.u32 1.1754944e-38, %v558
        %v560 = vsel %vm557, %v559, %v555
        %v561 = vmul.f32 %v536, %v560
        %v562 = vmin.f32 %v561, 1.0
        %v563 = vmax.f32 %v562, -1.0
        %v564 = vmul.f32 %v322, %v322
        %v565 = vmin.f32 16.0, %v564
        %v566 = vmul.f32 %v565, 2.1237322e-06
        %v567 = vadd.f32 %v566, 0.00028619796
        %v568 = vmul.f32 %v565, %v567
        %v569 = vadd.f32 %v568, 0.0036580483
        %v570 = vmul.f32 %v565, %v569
        %v571 = vadd.f32 %v570, 0.05243302
        %v572 = vmul.f32 %v565, %v571
        %v573 = vadd.f32 %v572, 0.18741608
        %v574 = vmul.f32 %v565, %v573
        %v575 = vadd.f32 %v574, 1.1283791
        %v576 = vmul.f32 %v322, %v575
        %v577 = vmul.f32 %v565, 3.8918573e-05
        %v578 = vadd.f32 %v577, 0.001143296
        %v579 = vmul.f32 %v565, %v578
        %v580 = vadd.f32 %v579, 0.014752088
        %v581 = vmul.f32 %v565, %v580
        %v582 = vadd.f32 %v581, 0.112945676
        %v583 = vmul.f32 %v565, %v582
        %v584 = vadd.f32 %v583, 0.4994258
        %v585 = vmul.f32 %v565, %v584
        %v586 = vadd.f32 %v585, 1.0
        %v587 = vrcp.pop %v586
        %v588 = vmul.f32 %v586, %v587
        %v589 = vsub.f32 1.0, %v588
        %v590 = vmul.f32 %v587, %v589
        %v591 = vadd.f32 %v587, %v590
        %vm592 = vweird.f32 %v586
        %vm593 = vweird.f32 %v587
        %vm594 = vmor %vm592, %vm593
        %v595 = vsel %vm594, %v587, %v591
        %v596 = vand.u32 2147483647, %v586
        %vm597 = vcmp.eq.f32.partialorder %v596, 8.507059e+37
        %v598 = vand.u32 %v586, 2147483648
        %v599 = vor.u32 1.1754944e-38, %v598
        %v600 = vsel %vm597, %v599, %v595
        %v601 = vmul.f32 %v576, %v600
        %v602 = vmin.f32 %v601, 1.0
        %v603 = vmax.f32 %v602, -1.0
        %v604 = vmul.f32 %v323, %v323
        %v605 = vmin.f32 16.0, %v604
        %v606 = vmul.f32 %v605, 2.1237322e-06
        %v607 = vadd.f32 %v606, 0.00028619796
        %v608 = vmul.f32 %v605, %v607
        %v609 = vadd.f32 %v608, 0.0036580483
        %v610 = vmul.f32 %v605, %v609
        %v611 = vadd.f32 %v610, 0.05243302
        %v612 = vmul.f32 %v605, %v611
        %v613 = vadd.f32 %v612, 0.18741608
        %v614 = vmul.f32 %v605, %v613
        %v615 = vadd.f32 %v614, 1.1283791
        %v616 = vmul.f32 %v323, %v615
        %v617 = vmul.f32 %v605, 3.8918573e-05
        %v618 = vadd.f32 %v617, 0.001143296
        %v619 = vmul.f32 %v605, %v618
        %v620 = vadd.f32 %v619, 0.014752088
        %v621 = vmul.f32 %v605, %v620
        %v622 = vadd.f32 %v621, 0.112945676
        %v623 = vmul.f32 %v605, %v622
        %v624 = vadd.f32 %v623, 0.4994258
        %v625 = vmul.f32 %v605, %v624
        %v626 = vadd.f32 %v625, 1.0
        %v627 = vrcp.pop %v626
        %v628 = vmul.f32 %v626, %v627
        %v629 = vsub.f32 1.0, %v628
        %v630 = vmul.f32 %v627, %v629
        %v631 = vadd.f32 %v627, %v630
        %vm632 = vweird.f32 %v626
        %vm633 = vweird.f32 %v627
        %vm634 = vmor %vm632, %vm633
        %v635 = vsel %vm634, %v627, %v631
        %v636 = vand.u32 2147483647, %v626
        %vm637 = vcmp.eq.f32.partialorder %v636, 8.507059e+37
        %v638 = vand.u32 %v626, 2147483648
        %v639 = vor.u32 1.1754944e-38, %v638
        %v640 = vsel %vm637, %v639, %v635
        %v641 = vmul.f32 %v616, %v640
        %v642 = vmin.f32 %v641, 1.0
        %v643 = vmax.f32 %v642, -1.0
        %v644 = vadd.f32 %v363, 1.0
        %v645 = vadd.f32 %v403, 1.0
        %v646 = vadd.f32 %v443, 1.0
        %v647 = vadd.f32 %v483, 1.0
        %v648 = vadd.f32 %v523, 1.0
        %v649 = vadd.f32 %v563, 1.0
        %v650 = vadd.f32 %v603, 1.0
        %v651 = vadd.f32 %v643, 1.0
        %v652 = vmul.f32 %v308, %v644
        %v653 = vmul.f32 %v309, %v645
        %v654 = vmul.f32 %v310, %v646
        %v655 = vmul.f32 %v311, %v647
        %v656 = vmul.f32 %v312, %v648
        %v657 = vmul.f32 %v313, %v649
        %v658 = vmul.f32 %v314, %v650
        %v659 = vmul.f32 %v315, %v651
        %v660 = vld [vmem:[%s3] sm:$0xff]
        %v661 = vld [vmem:[%s3 + $0x8] sm:$0xff]
        %v662 = vld [vmem:[%s3 + $0x10] sm:$0xff]
        %v663 = vld [vmem:[%s3 + $0x18] sm:$0xff]
        %v664 = vld [vmem:[%s3 + $0x20] sm:$0xff]
        %v665 = vld [vmem:[%s3 + $0x28] sm:$0xff]
        %v666 = vld [vmem:[%s3 + $0x30] sm:$0xff]
        %v667 = vld [vmem:[%s3 + $0x38] sm:$0xff]
        %v668 = vld [vmem:[%s3 + $0x40] sm:$0xff]
        %v669 = vld [vmem:[%s3 + $0x48] sm:$0xff]
        %v670 = vld [vmem:[%s3 + $0x50] sm:$0xff]
        %v671 = vld [vmem:[%s3 + $0x58] sm:$0xff]
        %v672 = vld [vmem:[%s3 + $0x60] sm:$0xff]
        %v673 = vld [vmem:[%s3 + $0x68] sm:$0xff]
        %v674 = vld [vmem:[%s3 + $0x70] sm:$0xff]
        %v675 = vld [vmem:[%s3 + $0x78] sm:$0xff]
        %v676 = vld [vmem:[%s4] sm:$0x1]
        %v678 = vperm.slane %v676, 0
        %680 = vmatpush.msra.mxu0 %v675
        %681 = vmatpush.msra.mxu0 %v674
        %682 = vmatpush.msra.mxu0 %v673
        %683 = vmatpush.msra.mxu0 %v672
        %684 = vmatpush.msra.mxu0 %v671
        %685 = vmatpush.msra.mxu0 %v670
        %686 = vmatpush.msra.mxu0 %v669
        %687 = vmatpush.msra.mxu0 %v668
        %688 = vmatpush.msra.mxu0 %v667
        %689 = vmatpush.msra.mxu0 %v666
        %690 = vmatpush.msra.mxu0 %v665
        %691 = vmatpush.msra.mxu0 %v664
        %692 = vmatpush.msra.mxu0 %v663
        %693 = vmatpush.msra.mxu0 %v662
        %694 = vmatpush.msra.mxu0 %v661
        %695 = vmatpush.msra.mxu0 %v660
        %696 = vmatmul.f32.gmra.mxu0 %v652
        %v697 = vpop.f32.mrf.mxu0
        %v698 = vadd.f32 %v678, %v697
        %699 = vmatmul.f32.gmra.mxu0 %v653
        %v700 = vpop.f32.mrf.mxu0
        %v701 = vadd.f32 %v678, %v700
        %702 = vmatmul.f32.gmra.mxu0 %v654
        %v703 = vpop.f32.mrf.mxu0
        %v704 = vadd.f32 %v678, %v703
        %705 = vmatmul.f32.gmra.mxu0 %v655
        %v706 = vpop.f32.mrf.mxu0
        %v707 = vadd.f32 %v678, %v706
        %708 = vmatmul.f32.gmra.mxu0 %v656
        %v709 = vpop.f32.mrf.mxu0
        %v710 = vadd.f32 %v678, %v709
        %711 = vmatmul.f32.gmra.mxu0 %v657
        %v712 = vpop.f32.mrf.mxu0
        %v713 = vadd.f32 %v678, %v712
        %714 = vmatmul.f32.gmra.mxu0 %v658
        %v715 = vpop.f32.mrf.mxu0
        %v716 = vadd.f32 %v678, %v715
        %717 = vmatmul.f32.gmra.mxu0 %v659
        %v718 = vpop.f32.mrf.mxu0
        %v719 = vadd.f32 %v678, %v718
        %720 = vdwg.mxu0
        %721 = vst.msk [vmem:[%s218] sm:$0xff] %vm242, %v698
        %722 = vst.msk [vmem:[%s218 + $0x8] sm:$0xff] %vm242, %v701
        %723 = vst.msk [vmem:[%s218 + $0x10] sm:$0xff] %vm242, %v704
        %724 = vst.msk [vmem:[%s218 + $0x18] sm:$0xff] %vm242, %v707
        %725 = vst.msk [vmem:[%s218 + $0x20] sm:$0xff] %vm242, %v710
        %726 = vst.msk [vmem:[%s218 + $0x28] sm:$0xff] %vm242, %v713
        %727 = vst.msk [vmem:[%s218 + $0x30] sm:$0xff] %vm242, %v716
        %728 = vst.msk [vmem:[%s218 + $0x38] sm:$0xff] %vm242, %v719
        %s729 = sand.u32 %s137, 1
        %s730 = scalar_lea.sflag [#allocation3], %s729
        %s731 = sand.u32 %s137, 1
        %s732 = smul.addr %s731, 64
        %s733 = scalar_lea.vmem [#allocation2], %s732
        // Predicated region
        $region41: #{voxel_ffn.1} parent=39 // pred_check
          %p734 = pneg %p147
        $region42: #{voxel_ffn.1} parent=39 // pred_check_branch
          %736 = sbr.rel (%p734) target = $region44
        $region43: #{voxel_ffn.1} parent=39 // pred_region
          %s737 = smul.u32 8, %s19
          %739 = vsyncadd %s730, 0
          %s740 = smul.addr %s737, 8
          %s741 = scalar_lea.hbm %s5, %s740
          %s742 = sshll.u32 %s733, 4
          %s743 = int_to_ptr.vmem [resolvable:$true] %s742
          %s744 = sshll.u32 %s741, 4
          %s745 = int_to_ptr.hbm [resolvable:$true] %s744
          %750 = dma.vmem_to_hbm [thread:$0]  %s743, 1024, %s745, %s730, 128, 128, 8
        $region44: #{voxel_ffn.1} parent=39 // pred_fallthru
          _
      $region40: #{voxel_ffn.1} parent=5 // pred_fallthru
        _
      %p751 = scmp.le.s32.totalorder 2, %s14
      // Predicated region
      $region45: #{voxel_ffn.1} parent=5 // pred_check
        %p752 = pneg %p751
      $region46: #{voxel_ffn.1} parent=5 // pred_check_branch
        %754 = sbr.rel (%p752) target = $region48
      $region47: #{voxel_ffn.1} parent=5 // pred_region
        %s755 = ssub.s32 %s14, 2
        // Predicated region
        $region49: #{voxel_ffn.1} parent=47 // pred_check
          %p756 = pneg %p153
        $region50: #{voxel_ffn.1} parent=47 // pred_check_branch
          %758 = sbr.rel (%p756) target = $region52
        $region51: #{voxel_ffn.1} parent=47 // pred_region
          %s759 = sand.u32 %s138, 1
          %s760 = scalar_lea.sflag [#allocation3], %s759
          %s761 = sand.u32 %s138, 1
          %s762 = smul.addr %s761, 64
          %s763 = scalar_lea.vmem [#allocation2], %s762
          %765 = dma.done %s760, 1024
        $region52: #{voxel_ffn.1} parent=47 // pred_fallthru
          _
      $region48: #{voxel_ffn.1} parent=5 // pred_fallthru
        _
    $region6: #{voxel_ffn.1} parent=1 // loop_footer
      %s18 = sadd.s32 1, %s14
    $region7: #{voxel_ffn.1} parent=1 // loop_footer_branch
      %13 = sbr.rel target = $region3
    $region8: #{voxel_ffn.1} parent=1 // loop_exit
      _
    %766 = vsyncpa [#allocation3], 1
    %s767 = scalar_lea.sflag [#allocation3], 1
    %768 = vsyncpa %s767, 1

</llo_original>
